<compile_context>
chip_gen: v5e
topology: v5e:2x2
jax: 0.10.0
libtpu: 0.0.40
codegen_flags: <defaults>
</compile_context>

<pallas_src>
import functools

import numpy as np

import jax
import jax.numpy as jnp
from jax.experimental import pallas as pl
from jax.experimental.pallas import tpu as pltpu


def _fused_conv1x1_hardswish_kernel(
    w_ref, x_ref, sel_ref, o_ref, *,
    n, c, cout, cin_g, cout_g, nh, nw, i0, j0, hs, stride,
):
    """Fully fused: strided sample + grouped 1x1 conv + hardswish + zero border.

    w_ref:   SMEM (Cout*Cin_g,) flat scalar weights
    x_ref:   VMEM (N*C*H, W)    full input, rows = (n, c, h)
    sel_ref: VMEM (W, nw)       0/1 column-selection matrix
    o_ref:   VMEM (N, Cout, Ho, Wo) full conv output map
    """
    # 1) Zero the full canvas once.  The border stays zero because the 1x1
    #    conv has no bias and hardswish(0) == 0 (guarded in the wrapper).
    o_ref[...] = jnp.zeros_like(o_ref)

    # 2) Sample the input rows the stride-2 conv actually reads, for all
    #    (n, c) at once, with a single sublane-strided load.  The wanted rows
    #    form one uniform stride-`stride` progression because H == stride*nh
    #    (asserted in the wrapper).
    nr = n * c * nh
    xh = x_ref[pl.ds(hs, nr, stride), :]                          # (N*C*nh, W)

    # 3) Column sampling as a tiny 0/1 matmul (MXU is otherwise idle; exact
    #    in f32 since each output element is x * 1.0 plus zeros).
    xs = jnp.dot(xh, sel_ref[...], preferred_element_type=jnp.float32)  # (N*C*nh, nw)

    # 4) Back to (N, C, nh, nw): sublane-tile-aligned leading split (pure
    #    vreg relabeling, trailing dim unchanged).
    x4 = xs.reshape(n, c, nh, nw)

    # 5) Grouped 1x1 channel mix via scalar-broadcast VPU FMAs (a 2x2 mix:
    #    MXU would be idle waste).  All output channels stacked so the final
    #    write is one store.
    chans = []
    for co in range(cout):
        g = co // cout_g
        base = g * cin_g
        v = w_ref[co * cin_g] * x4[:, base]
        for j in range(1, cin_g):
            v = v + w_ref[co * cin_g + j] * x4[:, base + j]
        chans.append(v)                                           # (N, nh, nw)
    v1 = jnp.stack(chans, axis=1)                                 # (N, Cout, nh, nw)

    # 6) hardswish + a single whole-tile store into the interior window.
    y = v1 * jnp.clip(v1 + 3.0, 0.0, 6.0) * (1.0 / 6.0)
    o_ref[:, :, pl.ds(i0, nh), pl.ds(j0, nw)] = y.astype(o_ref.dtype)


@functools.partial(jax.jit, static_argnames=("stride", "padding", "groups"))
def model_forward(x, weight, *, stride=2, padding=5, groups=2):
    """x: (N, C, H, W) f32, weight: (Cout, Cin//groups, 1, 1) f32, no bias."""
    N, C, H, W = x.shape
    Cout, Cin_g, kh, kw = weight.shape
    assert kh == 1 and kw == 1, "1x1 kernel only"
    G = groups
    Cout_g = Cout // G
    assert C == G * Cin_g and Cout == G * Cout_g

    # Full conv output spatial size.
    Ho = (H + 2 * padding - 1) // stride + 1
    Wo = (W + 2 * padding - 1) // stride + 1

    # Interior output window whose 1x1 tap lands inside the real image; the
    # rest of the map is conv(0) = 0 -> hardswish(0) = 0.  This shortcut
    # relies on bias=None and activation(0)=0 (review correctness note).
    i0 = -(-padding // stride)            # ceil(padding / stride)
    i1 = (H - 1 + padding) // stride
    j0 = -(-padding // stride)
    j1 = (W - 1 + padding) // stride
    nh = i1 - i0 + 1
    nw = j1 - j0 + 1
    hs = stride * i0 - padding            # first sampled input row
    ws = stride * j0 - padding            # first sampled input col

    # Needed so the sampled rows of the (N*C*H, W) view form one uniform
    # stride-`stride` progression (kernel step 2).
    assert H == stride * nh, "fused row sampling requires H == stride * nh"

    # Free contiguous reshapes (bitcasts under jit): 2D input view and a flat
    # 1D SMEM weight table (review #4: avoid 2D SMEM padding).
    x2 = x.reshape(N * C * H, W)
    wflat = weight.reshape(Cout * Cin_g)

    # 0/1 column-selection matrix — a compile-time constant under jit.
    sel_np = np.zeros((W, nw), dtype=np.float32)
    sel_np[ws + stride * np.arange(nw), np.arange(nw)] = 1.0
    sel = jnp.asarray(sel_np)

    kernel = functools.partial(
        _fused_conv1x1_hardswish_kernel,
        n=N, c=C, cout=Cout, cin_g=Cin_g, cout_g=Cout_g,
        nh=nh, nw=nw, i0=i0, j0=j0, hs=hs, stride=stride,
    )

    # Single invocation, no grid: the whole problem is ~10 KiB (<< VMEM on
    # v5e/v6e/v7x).  Add a 'parallel' grid axis over N only if scaled up.
    return pl.pallas_call(
        kernel,
        out_shape=jax.ShapeDtypeStruct((N, Cout, Ho, Wo), x.dtype),
        in_specs=[
            pl.BlockSpec(memory_space=pltpu.MemorySpace.SMEM),   # flat weights
            pl.BlockSpec(memory_space=pltpu.MemorySpace.VMEM),   # x (N*C*H, W)
            pl.BlockSpec(memory_space=pltpu.MemorySpace.VMEM),   # col selector
        ],
        out_specs=pl.BlockSpec(memory_space=pltpu.MemorySpace.VMEM),
    )(wflat, x2, sel)


def reference_forward(x, weight, *, stride=2, padding=5, groups=2):
    v1 = jax.lax.conv_general_dilated(
        x, weight,
        window_strides=(stride, stride),
        padding=((padding, padding), (padding, padding)),
        dimension_numbers=("NCHW", "OIHW", "NCHW"),
        feature_group_count=groups,
    )
    return v1 * jnp.clip(v1 + 3.0, 0.0, 6.0) / 6.0


if __name__ == "__main__":
    key = jax.random.PRNGKey(0)
    kx, kw = jax.random.split(key)

    N, C, H, W = 2, 4, 16, 16
    groups = 2
    x = jax.random.normal(kx, (N, C, H, W), dtype=jnp.float32)
    # Conv2d weight shape: (out_channels, in_channels // groups, 1, 1)
    weight = jax.random.normal(kw, (C, C // groups, 1, 1), dtype=jnp.float32) * 0.1

    out = model_forward(x, weight, stride=2, padding=5, groups=groups)
    out = jax.block_until_ready(out)

    ref = reference_forward(x, weight, stride=2, padding=5, groups=groups)
    assert out.shape == ref.shape, (out.shape, ref.shape)
    assert jnp.allclose(out, ref, atol=1e-5, rtol=1e-5), float(
        jnp.max(jnp.abs(out - ref))
    )

    print("KERNEL_OK")
</pallas_src>

<mosaic_0001>
module attributes {stable_mosaic.version = 11 : i64} {
  func.func @_fused_conv1x1_hardswish_kernel(%arg0: memref<8xf32, #tpu.memory_space<smem>>, %arg1: memref<128x16xf32, #tpu.memory_space<vmem>>, %arg2: memref<16x8xf32, #tpu.memory_space<vmem>>, %arg3: memref<2x4x13x13xf32, #tpu.memory_space<vmem>>) attributes {dimension_semantics = [], scalar_prefetch = 0 : i64, scratch_operands = 0 : i64, tpu.core_type = #tpu.core_type<tc>} {
    %cst = arith.constant 0.000000e+00 : f32
    %0 = vector.broadcast %cst : f32 to vector<2x4x13x13xf32>
    %c0 = arith.constant 0 : index
    %c0_0 = arith.constant 0 : index
    %c0_1 = arith.constant 0 : index
    %c0_2 = arith.constant 0 : index
    %1 = vector.load %arg3[%c0, %c0_0, %c0_1, %c0_2] : memref<2x4x13x13xf32, #tpu.memory_space<vmem>>, vector<2x4x13x13xf32>
    tpu.vector_store %arg3[%c0, %c0_0, %c0_1, %c0_2], %0 {strides = array<i32>} : memref<2x4x13x13xf32, #tpu.memory_space<vmem>>, vector<2x4x13x13xf32>,
    %c1 = arith.constant 1 : index
    %c0_3 = arith.constant 0 : index
    %2 = tpu.strided_load %arg1[%c1, %c0_3] {strides = array<i32: 2, 1>} : memref<128x16xf32, #tpu.memory_space<vmem>>, vector<64x16xf32>
    %c0_4 = arith.constant 0 : index
    %c0_5 = arith.constant 0 : index
    %3 = vector.load %arg2[%c0_4, %c0_5] : memref<16x8xf32, #tpu.memory_space<vmem>>, vector<16x8xf32>
    %cst_6 = arith.constant dense<0.000000e+00> : vector<64x8xf32>
    %4 = tpu.matmul %2, %3, %cst_6 {dimension_numbers = #tpu.dot_dimension_numbers<[1], [0], [0], [1], [0, 0, 1, 1], [], []>} : vector<64x16xf32>, vector<16x8xf32>, vector<64x8xf32> -> vector<64x8xf32>
    %5 = vector.shape_cast %4 : vector<64x8xf32> to vector<2x4x8x8xf32>
    %c0_7 = arith.constant 0 : index
    %6 = memref.load %arg0[%c0_7] : memref<8xf32, #tpu.memory_space<smem>>
    %7 = vector.extract_strided_slice %5 {offsets = [0, 0, 0, 0], sizes = [2, 1, 8, 8], strides = [1, 1, 1, 1]} : vector<2x4x8x8xf32> to vector<2x1x8x8xf32>
    %8 = vector.shape_cast %7 : vector<2x1x8x8xf32> to vector<2x8x8xf32>
    %9 = vector.broadcast %6 : f32 to vector<2x8x8xf32>
    %10 = arith.mulf %9, %8 : vector<2x8x8xf32>
    %c1_8 = arith.constant 1 : index
    %11 = memref.load %arg0[%c1_8] : memref<8xf32, #tpu.memory_space<smem>>
    %12 = vector.extract_strided_slice %5 {offsets = [0, 1, 0, 0], sizes = [2, 1, 8, 8], strides = [1, 1, 1, 1]} : vector<2x4x8x8xf32> to vector<2x1x8x8xf32>
    %13 = vector.shape_cast %12 : vector<2x1x8x8xf32> to vector<2x8x8xf32>
    %14 = vector.broadcast %11 : f32 to vector<2x8x8xf32>
    %15 = arith.mulf %14, %13 : vector<2x8x8xf32>
    %16 = arith.addf %10, %15 : vector<2x8x8xf32>
    %c2 = arith.constant 2 : index
    %17 = memref.load %arg0[%c2] : memref<8xf32, #tpu.memory_space<smem>>
    %18 = vector.extract_strided_slice %5 {offsets = [0, 0, 0, 0], sizes = [2, 1, 8, 8], strides = [1, 1, 1, 1]} : vector<2x4x8x8xf32> to vector<2x1x8x8xf32>
    %19 = vector.shape_cast %18 : vector<2x1x8x8xf32> to vector<2x8x8xf32>
    %20 = vector.broadcast %17 : f32 to vector<2x8x8xf32>
    %21 = arith.mulf %20, %19 : vector<2x8x8xf32>
    %c3 = arith.constant 3 : index
    %22 = memref.load %arg0[%c3] : memref<8xf32, #tpu.memory_space<smem>>
    %23 = vector.extract_strided_slice %5 {offsets = [0, 1, 0, 0], sizes = [2, 1, 8, 8], strides = [1, 1, 1, 1]} : vector<2x4x8x8xf32> to vector<2x1x8x8xf32>
    %24 = vector.shape_cast %23 : vector<2x1x8x8xf32> to vector<2x8x8xf32>
    %25 = vector.broadcast %22 : f32 to vector<2x8x8xf32>
    %26 = arith.mulf %25, %24 : vector<2x8x8xf32>
    %27 = arith.addf %21, %26 : vector<2x8x8xf32>
    %c4 = arith.constant 4 : index
    %28 = memref.load %arg0[%c4] : memref<8xf32, #tpu.memory_space<smem>>
    %29 = vector.extract_strided_slice %5 {offsets = [0, 2, 0, 0], sizes = [2, 1, 8, 8], strides = [1, 1, 1, 1]} : vector<2x4x8x8xf32> to vector<2x1x8x8xf32>
    %30 = vector.shape_cast %29 : vector<2x1x8x8xf32> to vector<2x8x8xf32>
    %31 = vector.broadcast %28 : f32 to vector<2x8x8xf32>
    %32 = arith.mulf %31, %30 : vector<2x8x8xf32>
    %c5 = arith.constant 5 : index
    %33 = memref.load %arg0[%c5] : memref<8xf32, #tpu.memory_space<smem>>
    %34 = vector.extract_strided_slice %5 {offsets = [0, 3, 0, 0], sizes = [2, 1, 8, 8], strides = [1, 1, 1, 1]} : vector<2x4x8x8xf32> to vector<2x1x8x8xf32>
    %35 = vector.shape_cast %34 : vector<2x1x8x8xf32> to vector<2x8x8xf32>
    %36 = vector.broadcast %33 : f32 to vector<2x8x8xf32>
    %37 = arith.mulf %36, %35 : vector<2x8x8xf32>
    %38 = arith.addf %32, %37 : vector<2x8x8xf32>
    %c6 = arith.constant 6 : index
    %39 = memref.load %arg0[%c6] : memref<8xf32, #tpu.memory_space<smem>>
    %40 = vector.extract_strided_slice %5 {offsets = [0, 2, 0, 0], sizes = [2, 1, 8, 8], strides = [1, 1, 1, 1]} : vector<2x4x8x8xf32> to vector<2x1x8x8xf32>
    %41 = vector.shape_cast %40 : vector<2x1x8x8xf32> to vector<2x8x8xf32>
    %42 = vector.broadcast %39 : f32 to vector<2x8x8xf32>
    %43 = arith.mulf %42, %41 : vector<2x8x8xf32>
    %c7 = arith.constant 7 : index
    %44 = memref.load %arg0[%c7] : memref<8xf32, #tpu.memory_space<smem>>
    %45 = vector.extract_strided_slice %5 {offsets = [0, 3, 0, 0], sizes = [2, 1, 8, 8], strides = [1, 1, 1, 1]} : vector<2x4x8x8xf32> to vector<2x1x8x8xf32>
    %46 = vector.shape_cast %45 : vector<2x1x8x8xf32> to vector<2x8x8xf32>
    %47 = vector.broadcast %44 : f32 to vector<2x8x8xf32>
    %48 = arith.mulf %47, %46 : vector<2x8x8xf32>
    %49 = arith.addf %43, %48 : vector<2x8x8xf32>
    %50 = vector.shape_cast %16 : vector<2x8x8xf32> to vector<2x1x8x8xf32>
    %51 = vector.shape_cast %27 : vector<2x8x8xf32> to vector<2x1x8x8xf32>
    %52 = vector.shape_cast %38 : vector<2x8x8xf32> to vector<2x1x8x8xf32>
    %53 = vector.shape_cast %49 : vector<2x8x8xf32> to vector<2x1x8x8xf32>
    %54 = tpu.concatenate %50, %51, %52, %53 in 1 : vector<2x1x8x8xf32>, vector<2x1x8x8xf32>, vector<2x1x8x8xf32>, vector<2x1x8x8xf32> -> vector<2x4x8x8xf32>
    %cst_9 = arith.constant 3.000000e+00 : f32
    %55 = vector.broadcast %cst_9 : f32 to vector<2x4x8x8xf32>
    %56 = arith.addf %54, %55 : vector<2x4x8x8xf32>
    %cst_10 = arith.constant 0.000000e+00 : f32
    %cst_11 = arith.constant 6.000000e+00 : f32
    %57 = vector.broadcast %cst_10 : f32 to vector<2x4x8x8xf32>
    %58 = arith.maximumf %57, %56 : vector<2x4x8x8xf32>
    %59 = vector.broadcast %cst_11 : f32 to vector<2x4x8x8xf32>
    %60 = arith.minimumf %59, %58 : vector<2x4x8x8xf32>
    %61 = arith.mulf %54, %60 : vector<2x4x8x8xf32>
    %cst_12 = arith.constant 0.166666672 : f32
    %62 = vector.broadcast %cst_12 : f32 to vector<2x4x8x8xf32>
    %63 = arith.mulf %61, %62 : vector<2x4x8x8xf32>
    %c0_13 = arith.constant 0 : index
    %c0_14 = arith.constant 0 : index
    %c3_15 = arith.constant 3 : index
    %c3_16 = arith.constant 3 : index
    %64 = vector.load %arg3[%c0_13, %c0_14, %c3_15, %c3_16] : memref<2x4x13x13xf32, #tpu.memory_space<vmem>>, vector<2x4x8x8xf32>
    tpu.vector_store %arg3[%c0_13, %c0_14, %c3_15, %c3_16], %63 {strides = array<i32>} : memref<2x4x13x13xf32, #tpu.memory_space<vmem>>, vector<2x4x8x8xf32>,
    return
  }
}

</mosaic_0001>

<llo_original>
// kernel: model_forward.1
$region0: #{model_forward.1}
  #allocation0 [shape = 'u32[]', space=smem, size = 0x4, offset = 0x4, fixed_abs, tag = 'smem constant byte address 0x4 - core index']
  #allocation1 [shape = 'u32[72,128]{1,0:T(1,128)}', space=vmem, size = 0x9000, scoped, tag = 'internal scratch']
  %s0 = inlined_call_operand.vmem [shape: f32[8], index: 0, kind: input, shape index: {}]
  %s1 = inlined_call_operand.hbm [shape: f32[128,16], index: 1, kind: input, shape index: {}]
  %s2 = inlined_call_operand.hbm [shape: f32[16,8], index: 2, kind: input, shape index: {}]
  %s3 = inlined_call_operand.vmem [shape: f32[2,4,13,13], index: 3, kind: output, shape index: {}]
  %s4 = sld [smem:[#allocation0]]
  $region34: #{model_forward.1} parent=0
    _
  %s6 = ssub.s32 1, %s4
  %s7 = scalar_select 0, %s6, %s4
  $region1: #{model_forward.1} parent=0
    #allocation2 [shape = 'u8[512]{0}', space=smem, size = 0x200, scoped, tag = 'input window, operand 0, single buffered']
    #allocation3 [shape = 's32[1]{0}', space=sflag, size = 0x4, scoped, tag = 'scoped memory for model_forward.1']
    #allocation4 [shape = 's32[1]{0}', space=sflag, size = 0x4, scoped, tag = 'scoped memory for model_forward.1']
    #allocation5 [shape = 'u8[65536]{0}', space=vmem, size = 0x10000, scoped, tag = 'input window, operand 1, single buffered']
    #allocation6 [shape = 'u8[8192]{0}', space=vmem, size = 0x2000, scoped, tag = 'input window, operand 2, single buffered']
    #allocation7 [shape = 's32[1]{0}', space=sflag, size = 0x4, scoped, tag = 'scoped memory for model_forward.1']
    %8 = vsyncpa [#allocation4], 0
    %9 = vsyncpa [#allocation3], 0
    %10 = vsyncpa [#allocation7], 0
    // Predicated region
    $region2: #{model_forward.1} parent=1 // pred_check
      _
    $region3: #{model_forward.1} parent=1 // pred_check_branch
      %12 = sbr.rel (0) target = $region5
    $region4: #{model_forward.1} parent=1 // pred_region
      %14 = vsyncadd [#allocation4], 0
      %s16 = sshll.u32 %s0, 4
      %s17 = int_to_ptr.vmem [resolvable:$true] %s16
      %19 = dma.vmem_to_smem %s17, 16, [#allocation2], [#allocation4]
    $region5: #{model_forward.1} parent=1 // pred_fallthru
      _
    // Predicated region
    $region6: #{model_forward.1} parent=1 // pred_check
      _
    $region7: #{model_forward.1} parent=1 // pred_check_branch
      %21 = sbr.rel (0) target = $region9
    $region8: #{model_forward.1} parent=1 // pred_region
      %23 = vsyncadd [#allocation3], 0
      %s24 = sshll.u32 %s1, 4
      %s25 = int_to_ptr.hbm [resolvable:$true] %s24
      %s26 = sshll.u32 [#allocation5], 4
      %s27 = int_to_ptr.vmem [resolvable:$true] %s26
      %32 = dma.hbm_to_vmem [thread:$0]  %s25, 2048, %s27, [#allocation3], 128, 128, 8
    $region9: #{model_forward.1} parent=1 // pred_fallthru
      _
    // Predicated region
    $region10: #{model_forward.1} parent=1 // pred_check
      _
    $region11: #{model_forward.1} parent=1 // pred_check_branch
      %34 = sbr.rel (0) target = $region13
    $region12: #{model_forward.1} parent=1 // pred_region
      %36 = vsyncadd [#allocation7], 0
      %s37 = sshll.u32 %s2, 4
      %s38 = int_to_ptr.hbm [resolvable:$true] %s37
      %s39 = sshll.u32 [#allocation6], 4
      %s40 = int_to_ptr.vmem [resolvable:$true] %s39
      %45 = dma.hbm_to_vmem [thread:$0]  %s38, 256, %s40, [#allocation7], 128, 128, 8
    $region13: #{model_forward.1} parent=1 // pred_fallthru
      _
    // Predicated region
    $region14: #{model_forward.1} parent=1 // pred_check
      _
    $region15: #{model_forward.1} parent=1 // pred_check_branch
      %47 = sbr.rel (0) target = $region17
    $region16: #{model_forward.1} parent=1 // pred_region
      %49 = dma.done [#allocation4], 16
    $region17: #{model_forward.1} parent=1 // pred_fallthru
      _
    // Predicated region
    $region18: #{model_forward.1} parent=1 // pred_check
      _
    $region19: #{model_forward.1} parent=1 // pred_check_branch
      %51 = sbr.rel (0) target = $region21
    $region20: #{model_forward.1} parent=1 // pred_region
      %53 = dma.done [#allocation3], 2048
    $region21: #{model_forward.1} parent=1 // pred_fallthru
      _
    // Predicated region
    $region22: #{model_forward.1} parent=1 // pred_check
      _
    $region23: #{model_forward.1} parent=1 // pred_check_branch
      %55 = sbr.rel (0) target = $region25
    $region24: #{model_forward.1} parent=1 // pred_region
      %57 = dma.done [#allocation7], 256
    $region25: #{model_forward.1} parent=1 // pred_fallthru
      _
    %58 = sfence
    %vm59 = vcmask 105472
    %60 = vst.msk [vmem:[%s3] sm:$0xff] %vm59, 0.0
    %vm61 = vcmask 102400
    %62 = vst.msk [vmem:[%s3 + $0x8] sm:$0x1f] %vm61, 0.0
    %63 = vst.msk [vmem:[%s3 + $0x10] sm:$0xff] %vm59, 0.0
    %64 = vst.msk [vmem:[%s3 + $0x18] sm:$0x1f] %vm61, 0.0
    %65 = vst.msk [vmem:[%s3 + $0x20] sm:$0xff] %vm59, 0.0
    %66 = vst.msk [vmem:[%s3 + $0x28] sm:$0x1f] %vm61, 0.0
    %67 = vst.msk [vmem:[%s3 + $0x30] sm:$0xff] %vm59, 0.0
    %68 = vst.msk [vmem:[%s3 + $0x38] sm:$0x1f] %vm61, 0.0
    %69 = vst.msk [vmem:[%s3 + $0x40] sm:$0xff] %vm59, 0.0
    %70 = vst.msk [vmem:[%s3 + $0x48] sm:$0x1f] %vm61, 0.0
    %71 = vst.msk [vmem:[%s3 + $0x50] sm:$0xff] %vm59, 0.0
    %72 = vst.msk [vmem:[%s3 + $0x58] sm:$0x1f] %vm61, 0.0
    %73 = vst.msk [vmem:[%s3 + $0x60] sm:$0xff] %vm59, 0.0
    %74 = vst.msk [vmem:[%s3 + $0x68] sm:$0x1f] %vm61, 0.0
    %75 = vst.msk [vmem:[%s3 + $0x70] sm:$0xff] %vm59, 0.0
    %76 = vst.msk [vmem:[%s3 + $0x78] sm:$0x1f] %vm61, 0.0
    %s77 = scalar_lea.vmem [#allocation5], 1
    %v78 = vld [vmem:[%s77] ss:$2 sm:$0xff]
    %s79 = scalar_lea.vmem [#allocation5], 17
    %v80 = vld [vmem:[%s79] ss:$2 sm:$0xff]
    %s81 = scalar_lea.vmem [#allocation5], 33
    %v82 = vld [vmem:[%s81] ss:$2 sm:$0xff]
    %s83 = scalar_lea.vmem [#allocation5], 49
    %v84 = vld [vmem:[%s83] ss:$2 sm:$0xff]
    %s85 = scalar_lea.vmem [#allocation5], 65
    %v86 = vld [vmem:[%s85] ss:$2 sm:$0xff]
    %s87 = scalar_lea.vmem [#allocation5], 81
    %v88 = vld [vmem:[%s87] ss:$2 sm:$0xff]
    %s89 = scalar_lea.vmem [#allocation5], 97
    %v90 = vld [vmem:[%s89] ss:$2 sm:$0xff]
    %s91 = scalar_lea.vmem [#allocation5], 113
    %v92 = vld [vmem:[%s91] ss:$2 sm:$0xff]
    %v93 = vld [vmem:[#allocation6] sm:$0xff]
    %v94 = vld [vmem:[#allocation6 + $0x8] sm:$0xff]
    %vm95 = vcmask 130048
    %v97 = vsel %vm95, %v78, 0
    %v100 = vsel %vm95, %v80, 0
    %v103 = vsel %vm95, %v82, 0
    %v106 = vsel %vm95, %v84, 0
    %v109 = vsel %vm95, %v86, 0
    %v112 = vsel %vm95, %v88, 0
    %v115 = vsel %vm95, %v90, 0
    %v118 = vsel %vm95, %v92, 0
    %120 = vmatpush.msra.mxu0 0.0
    %121 = vmatpush.msra.mxu0 0.0
    %122 = vmatpush.msra.mxu0 0.0
    %123 = vmatpush.msra.mxu0 0.0
    %124 = vmatpush.msra.mxu0 0.0
    %125 = vmatpush.msra.mxu0 0.0
    %126 = vmatpush.msra.mxu0 0.0
    %127 = vmatpush.msra.mxu0 0.0
    %128 = vmatpush.msra.mxu0 0.0
    %129 = vmatpush.msra.mxu0 0.0
    %130 = vmatpush.msra.mxu0 0.0
    %131 = vmatpush.msra.mxu0 0.0
    %132 = vmatpush.msra.mxu0 0.0
    %133 = vmatpush.msra.mxu0 0.0
    %134 = vmatpush.msra.mxu0 %v94
    %135 = vmatpush.msra.mxu0 %v93
    %136 = vmatmul.f32.gmra.mxu0 %v97
    %v137 = vpop.f32.mrf.mxu0
    %v138 = vadd.f32 0.0, %v137
    %139 = vmatmul.f32.gmra.mxu0 %v100
    %v140 = vpop.f32.mrf.mxu0
    %v141 = vadd.f32 0.0, %v140
    %142 = vmatmul.f32.gmra.mxu0 %v103
    %v143 = vpop.f32.mrf.mxu0
    %v144 = vadd.f32 0.0, %v143
    %145 = vmatmul.f32.gmra.mxu0 %v106
    %v146 = vpop.f32.mrf.mxu0
    %v147 = vadd.f32 0.0, %v146
    %148 = vmatmul.f32.gmra.mxu0 %v109
    %v149 = vpop.f32.mrf.mxu0
    %v150 = vadd.f32 0.0, %v149
    %151 = vmatmul.f32.gmra.mxu0 %v112
    %v152 = vpop.f32.mrf.mxu0
    %v153 = vadd.f32 0.0, %v152
    %154 = vmatmul.f32.gmra.mxu0 %v115
    %v155 = vpop.f32.mrf.mxu0
    %v156 = vadd.f32 0.0, %v155
    %157 = vmatmul.f32.gmra.mxu0 %v118
    %v158 = vpop.f32.mrf.mxu0
    %v159 = vadd.f32 0.0, %v158
    %160 = vdwg.mxu0
    %s161 = sld [smem:[#allocation2]]
    %v162 = vstv %s161
    %v163 = vmul.f32 %v162, %v138
    %v164 = vmul.f32 %v162, %v150
    %s165 = sld [smem:[#allocation2 + $0x1]]
    %v166 = vstv %s165
    %v167 = vmul.f32 %v166, %v141
    %v168 = vmul.f32 %v166, %v153
    %v169 = vadd.f32 %v163, %v167
    %v170 = vadd.f32 %v164, %v168
    %s171 = sld [smem:[#allocation2 + $0x2]]
    %v172 = vstv %s171
    %v173 = vmul.f32 %v172, %v138
    %v174 = vmul.f32 %v172, %v150
    %s175 = sld [smem:[#allocation2 + $0x3]]
    %v176 = vstv %s175
    %v177 = vmul.f32 %v176, %v141
    %v178 = vmul.f32 %v176, %v153
    %v179 = vadd.f32 %v173, %v177
    %v180 = vadd.f32 %v174, %v178
    %s181 = sld [smem:[#allocation2 + $0x4]]
    %v182 = vstv %s181
    %v183 = vmul.f32 %v182, %v144
    %v184 = vmul.f32 %v182, %v156
    %s185 = sld [smem:[#allocation2 + $0x5]]
    %v186 = vstv %s185
    %v187 = vmul.f32 %v186, %v147
    %v188 = vmul.f32 %v186, %v159
    %v189 = vadd.f32 %v183, %v187
    %v190 = vadd.f32 %v184, %v188
    %s191 = sld [smem:[#allocation2 + $0x6]]
    %v192 = vstv %s191
    %v193 = vmul.f32 %v192, %v144
    %v194 = vmul.f32 %v192, %v156
    %s195 = sld [smem:[#allocation2 + $0x7]]
    %v196 = vstv %s195
    %v197 = vmul.f32 %v196, %v147
    %v198 = vmul.f32 %v196, %v159
    %v199 = vadd.f32 %v193, %v197
    %v200 = vadd.f32 %v194, %v198
    %v201 = vadd.f32 %v169, 3.0
    %v202 = vadd.f32 %v179, 3.0
    %v203 = vadd.f32 %v189, 3.0
    %v204 = vadd.f32 %v199, 3.0
    %v205 = vadd.f32 %v170, 3.0
    %v206 = vadd.f32 %v180, 3.0
    %v207 = vadd.f32 %v190, 3.0
    %v208 = vadd.f32 %v200, 3.0
    %v209 = vmax.f32 %v201, 0.0
    %v210 = vmax.f32 %v202, 0.0
    %v211 = vmax.f32 %v203, 0.0
    %v212 = vmax.f32 %v204, 0.0
    %v213 = vmax.f32 %v205, 0.0
    %v214 = vmax.f32 %v206, 0.0
    %v215 = vmax.f32 %v207, 0.0
    %v216 = vmax.f32 %v208, 0.0
    %v217 = vmin.f32 %v209, 6.0
    %v218 = vmin.f32 %v210, 6.0
    %v219 = vmin.f32 %v211, 6.0
    %v220 = vmin.f32 %v212, 6.0
    %v221 = vmin.f32 %v213, 6.0
    %v222 = vmin.f32 %v214, 6.0
    %v223 = vmin.f32 %v215, 6.0
    %v224 = vmin.f32 %v216, 6.0
    %v225 = vmul.f32 %v169, %v217
    %v226 = vmul.f32 %v179, %v218
    %v227 = vmul.f32 %v189, %v219
    %v228 = vmul.f32 %v199, %v220
    %v229 = vmul.f32 %v170, %v221
    %v230 = vmul.f32 %v180, %v222
    %v231 = vmul.f32 %v190, %v223
    %v232 = vmul.f32 %v200, %v224
    %v233 = vmul.f32 %v225, 0.16666667
    %v234 = vmul.f32 %v226, 0.16666667
    %v235 = vmul.f32 %v227, 0.16666667
    %v236 = vmul.f32 %v228, 0.16666667
    %v237 = vmul.f32 %v229, 0.16666667
    %v238 = vmul.f32 %v230, 0.16666667
    %v239 = vmul.f32 %v231, 0.16666667
    %v240 = vmul.f32 %v232, 0.16666667
    %249 = vrot.lane.b32.xlu0 %v233, 3
    %v250 = vpop.permute.xlu0 %249
    %251 = vrot.lane.b32.xlu0 %v234, 3
    %v252 = vpop.permute.xlu0 %251
    %253 = vrot.lane.b32.xlu0 %v235, 3
    %v254 = vpop.permute.xlu0 %253
    %255 = vrot.lane.b32.xlu0 %v236, 3
    %v256 = vpop.permute.xlu0 %255
    %257 = vrot.lane.b32.xlu0 %v237, 3
    %v258 = vpop.permute.xlu0 %257
    %259 = vrot.lane.b32.xlu0 %v238, 3
    %v260 = vpop.permute.xlu0 %259
    %261 = vrot.lane.b32.xlu0 %v239, 3
    %v262 = vpop.permute.xlu0 %261
    %263 = vrot.lane.b32.xlu0 %v240, 3
    %v264 = vpop.permute.xlu0 %263
    %vm273 = vcmask 89112
    %274 = vst.msk [vmem:[%s3 + $0x3] sm:$0xff] %vm273, %v250
    %275 = vst.msk [vmem:[%s3 + $0x13] sm:$0xff] %vm273, %v252
    %276 = vst.msk [vmem:[%s3 + $0x23] sm:$0xff] %vm273, %v254
    %277 = vst.msk [vmem:[%s3 + $0x33] sm:$0xff] %vm273, %v256
    %278 = vst.msk [vmem:[%s3 + $0x43] sm:$0xff] %vm273, %v258
    %279 = vst.msk [vmem:[%s3 + $0x53] sm:$0xff] %vm273, %v260
    %280 = vst.msk [vmem:[%s3 + $0x63] sm:$0xff] %vm273, %v262
    %281 = vst.msk [vmem:[%s3 + $0x73] sm:$0xff] %vm273, %v264
    // Predicated region
    $region26: #{model_forward.1} parent=1 // pred_check
      _
    $region27: #{model_forward.1} parent=1 // pred_check_branch
      %283 = sbr.rel (0) target = $region29
    $region28: #{model_forward.1} parent=1 // pred_region
      _
    $region29: #{model_forward.1} parent=1 // pred_fallthru
      _
    // Predicated region
    $region30: #{model_forward.1} parent=1 // pred_check
      _
    $region31: #{model_forward.1} parent=1 // pred_check_branch
      %285 = sbr.rel (0) target = $region33
    $region32: #{model_forward.1} parent=1 // pred_region
      _
    $region33: #{model_forward.1} parent=1 // pred_fallthru
      _
    %286 = vsyncpa [#allocation3], 1
    %287 = vsyncpa [#allocation7], 1
    %288 = vsyncpa [#allocation4], 1

</llo_original>
